<compile_context>
chip_gen: v6e
topology: v6e:2x2x1
jax: 0.10.0
libtpu: 0.0.40
codegen_flags: <defaults>
</compile_context>

<pallas_src>
import jax
import jax.numpy as jnp
from jax.experimental import pallas as pl
from jax.experimental.pallas import tpu as pltpu


def _q_attention_kernel(obs_ref, act_ref, mask_ref,
                        w_q_ref, b_q_ref, w_kv_ref, b_kv_ref,
                        out_ref):
    """One batch-block of the fused Q_Attention forward.

    obs_ref  [BB, A, O], act_ref [BB, N, S], mask_ref [A, N] or [BB, A, N]
    w_q_ref  [O, H]      obs_encoder∘query_proj (1/sqrt(H) folded in), b_q_ref [1, H]
    w_kv_ref [S, 3H+2]   action_encoder∘[key | value | 1 | key2@Wq2ᵀ | key2·bq2]
    b_kv_ref [1, 3H+2],  out_ref [BB, A, N]
    """
    BB, A, O = obs_ref.shape
    _, N, S = act_ref.shape
    H = w_q_ref.shape[1]

    # Flatten batch*rows so the projection matmuls use a big MXU M dimension.
    obs = obs_ref[...].reshape(BB * A, O)      # [BB*A, O]
    act = act_ref[...].reshape(BB * N, S)      # [BB*N, S]

    # Two folded row-pass matmuls (was six before encoder / query_proj2 folding).
    q1 = (jnp.dot(obs, w_q_ref[...], preferred_element_type=jnp.float32)
          + b_q_ref[...]).reshape(BB, A, H)
    kv = (jnp.dot(act, w_kv_ref[...], preferred_element_type=jnp.float32)
          + b_kv_ref[...]).reshape(BB, N, 3 * H + 2)

    k1 = kv[:, :, :H]                       # key_proj   ∘ action_encoder
    v1a = kv[:, :, H:2 * H + 1]             # value_proj ∘ encoder, + all-ones col
    k2a = kv[:, :, 2 * H + 1:]              # (key_proj2∘enc)@w_q2ᵀ, + key2·b_q2 col
    # TODO(synk): audit the Mosaic dump for vrot relayouts from these lane-offset
    # slices and hidden vxpose in the minor-dim-contracting einsums below; if
    # they land on the vex slot, split the fused matmul / restructure the dots.

    # Round-1 attention, softmax over actions (per-row stable).
    scores = jnp.einsum('bah,bnh->ban', q1, k1,
                        preferred_element_type=jnp.float32)        # [BB, A, N]
    scores = scores - jnp.max(scores, axis=-1, keepdims=True)
    e = jnp.exp(scores)
    denom = jnp.sum(e, axis=-1, keepdims=True)

    # Un-normalised attention @ [value | 1]: the trailing column reproduces the
    # denominator, so after normalisation it is ~1 and carries query_proj2's
    # bias through the folded logit contraction below.
    ea = jnp.einsum('ban,bnj->baj', e, v1a,
                    preferred_element_type=jnp.float32)            # [BB, A, H+1]
    attn = ea * pl.reciprocal(denom, approx=False)

    # logit = (attn @ w_q2 + b_q2) · key2   -- fully folded into k2a.
    logit = jnp.einsum('baj,bnj->ban', attn, k2a,
                       preferred_element_type=jnp.float32)         # [BB, A, N]

    mask = mask_ref[...]
    if mask.ndim == 2:                      # replicated 2-D mask, broadcast over BB
        mask = mask[None, :, :]
    logit = jnp.where(mask == 0, jnp.float32(-1e8), logit)

    # Numerically stable softplus: max(x,0) + log(1 + exp(-|x|)).
    out = jnp.maximum(logit, 0.0) + jnp.log(1.0 + jnp.exp(-jnp.abs(logit)))
    # TODO(synk): a lane-dense (BB, A*N) output slab would shrink the masked
    # vst count ~8x but needs a sublane->lane reshape whose Mosaic lowering is
    # not guaranteed; at these sizes the store slot is hidden under the
    # vex-slot matmul pushes, so keep the natural (BB, A, N) block.
    out_ref[...] = out.astype(out_ref.dtype)


def _pick_block_b(B, block_b):
    """Batch rows per grid step.

    * as large as possible (amortise the ~0.35us/step pipeline overhead),
    * at least 2 grid steps when B >= 16 (v7x shards the 'parallel' axis
      across its two TensorCores),
    * a divisor of B, so no host-side jnp.pad and no ragged edge blocks.
    """
    cap = min(block_b, B)
    if B >= 16:
        cap = min(cap, -(-B // 2))          # ceil(B/2): keep >= 2 grid steps
    bb = next(c for c in range(cap, 0, -1) if B % c == 0)
    # Degenerate divisor (e.g. prime B): one full-batch block beats many tiny steps.
    # TODO(synk): for a huge prime B, a near-divisor + Pallas ragged edge blocks
    # would be preferable to a single giant block.
    if bb * 4 < cap and B <= 4 * block_b:
        bb = B
    return max(1, bb)


def q_attention(obs, action, mask, params, *, block_b=512):
    """obs: [B,A,O] f32, action: [B,N,S] f32, mask: [A,N] or [B,A,N]."""
    B, A, O = obs.shape
    _, N, S = action.shape
    (w_obs, b_obs, w_act, b_act,
     w_q1, b_q1, w_k1, b_k1, w_v1, b_v1,
     w_q2, b_q2, w_k2, b_k2) = params
    H = w_obs.shape[1]
    f32 = jnp.float32

    obs = obs.astype(f32)
    action = action.astype(f32)
    mask = mask.astype(f32)

    # ---- host-side weight folding (exact algebra, no nonlinearity between
    #      the encoders and the projections) -------------------------------
    scale = f32(1.0 / (H ** 0.5))
    # obs path: obs_encoder -> query_proj, with the 1/sqrt(H) score scale folded.
    w_q = (w_obs @ w_q1) * scale                          # [O, H]
    b_q = (b_obs @ w_q1 + b_q1) * scale                   # [1, H]
    # action path: key / value / (key2 folded with query_proj2).
    w_k1f = w_act @ w_k1
    b_k1f = b_act @ w_k1 + b_k1
    w_v1f = w_act @ w_v1
    b_v1f = b_act @ w_v1 + b_v1
    w_k2f = w_act @ (w_k2 @ w_q2.T)
    b_k2f = (b_act @ w_k2 + b_k2) @ w_q2.T
    # extra fused columns: an all-ones column (zero weight, bias 1) that rides
    # through the attention average, and the per-action scalar b_q2 · key2.
    w_one = jnp.zeros((S, 1), f32)
    b_one = jnp.ones((1, 1), f32)
    w_s2 = w_act @ (w_k2 @ b_q2.T)                        # [S, 1]
    b_s2 = (b_act @ w_k2 + b_k2) @ b_q2.T                 # [1, 1]

    # fused action-side weight: [ k1 | v1 | 1 | k2@w_q2ᵀ | k2·b_q2 ]  -> [S, 3H+2]
    w_kv = jnp.concatenate([w_k1f, w_v1f, w_one, w_k2f, w_s2], axis=1)
    b_kv = jnp.concatenate([b_k1f, b_v1f, b_one, b_k2f, b_s2], axis=1)

    BB = _pick_block_b(B, block_b)
    nb = pl.cdiv(B, BB)                                    # BB divides B -> exact

    def data_spec(shape):
        return pl.BlockSpec((BB,) + shape, lambda b: (b, 0, 0))

    def const_spec(shape):
        # constant block index -> fetched once, never re-DMA'd across the grid
        return pl.BlockSpec(shape, lambda b, _n=len(shape): (0,) * _n)

    mask_spec = const_spec((A, N)) if mask.ndim == 2 else data_spec((A, N))

    in_specs = [
        data_spec((A, O)),                                 # obs
        data_spec((N, S)),                                 # action
        mask_spec,                                         # mask
        const_spec((O, H)), const_spec((1, H)),            # folded query weights
        const_spec((S, 3 * H + 2)), const_spec((1, 3 * H + 2)),  # fused k1|v1|1|k2f|s2
    ]

    out = pl.pallas_call(
        _q_attention_kernel,
        out_shape=jax.ShapeDtypeStruct((B, A, N), f32),
        grid=(nb,),
        in_specs=in_specs,
        out_specs=pl.BlockSpec((BB, A, N), lambda b: (b, 0, 0)),
        compiler_params=pltpu.CompilerParams(
            dimension_semantics=("parallel",),
            vmem_limit_bytes=32 * 1024 * 1024),
    )(obs, action, mask, w_q, b_q, w_kv, b_kv)

    return out


def _reference(obs, action, mask, params):
    """Pure-JAX reference mirroring the PyTorch Q_Attention.forward."""
    (w_obs, b_obs, w_act, b_act,
     w_q1, b_q1, w_k1, b_k1, w_v1, b_v1,
     w_q2, b_q2, w_k2, b_k2) = params
    H = w_obs.shape[1]
    enc_obs = obs @ w_obs + b_obs
    enc_act = action @ w_act + b_act
    query = enc_obs @ w_q1 + b_q1
    key = enc_act @ w_k1 + b_k1
    value = enc_act @ w_v1 + b_v1
    scores = jnp.einsum('bdh,bah->bda', query, key) / (H ** 0.5)
    weights = jax.nn.softmax(scores, axis=-1)
    query = jnp.einsum('bda,bah->bdh', weights, value)
    query = query @ w_q2 + b_q2
    key = enc_act @ w_k2 + b_k2
    q = jnp.einsum('bdh,bah->bda', query, key)
    m = mask if mask.ndim == 3 else mask[None]
    q = jnp.where(m == 0, jnp.float32(-1e8), q)
    return jax.nn.softplus(q)


def init_params(key, obs_size, action_size, hidden_dim):
    keys = jax.random.split(key, 14)

    def lin(kw, kb, fan_in, fan_out):
        bound = 1.0 / (fan_in ** 0.5)
        w = jax.random.uniform(kw, (fan_in, fan_out), jnp.float32, -bound, bound)
        b = jax.random.uniform(kb, (1, fan_out), jnp.float32, -bound, bound)
        return w, b

    w_obs, b_obs = lin(keys[0], keys[1], obs_size, hidden_dim)
    w_act, b_act = lin(keys[2], keys[3], action_size, hidden_dim)
    w_q1, b_q1 = lin(keys[4], keys[5], hidden_dim, hidden_dim)
    w_k1, b_k1 = lin(keys[6], keys[7], hidden_dim, hidden_dim)
    w_v1, b_v1 = lin(keys[8], keys[9], hidden_dim, hidden_dim)
    w_q2, b_q2 = lin(keys[10], keys[11], hidden_dim, hidden_dim)
    w_k2, b_k2 = lin(keys[12], keys[13], hidden_dim, hidden_dim)
    return (w_obs, b_obs, w_act, b_act,
            w_q1, b_q1, w_k1, b_k1, w_v1, b_v1,
            w_q2, b_q2, w_k2, b_k2)


if __name__ == "__main__":
    B, num_agent, num_action = 2, 8, 8
    obs_size, action_size, hidden_dim = 16, 12, 32

    key = jax.random.PRNGKey(0)
    k_obs, k_act, k_mask, k_params, k_extra = jax.random.split(key, 5)

    obs = jax.random.normal(k_obs, (B, num_agent, obs_size), jnp.float32)
    action = jax.random.normal(k_act, (B, num_action, action_size), jnp.float32)
    mask3 = (jax.random.uniform(k_mask, (B, num_agent, num_action)) > 0.3
             ).astype(jnp.float32)
    params = init_params(k_params, obs_size, action_size, hidden_dim)

    # Tolerance covers the f32 rounding-order change from the host-side weight
    # folds (encoder->projection and query_proj2->key_proj2), which are exact
    # algebra in infinite precision.
    ATOL = RTOL = 2e-4

    # Case 1: 3-D per-batch mask, single grid step (BB == B).
    out = jax.block_until_ready(q_attention(obs, action, mask3, params))
    ref = _reference(obs, action, mask3, params)
    assert out.shape == (B, num_agent, num_action)
    assert jnp.allclose(out, ref, atol=ATOL, rtol=RTOL), "mismatch (3-D mask)"

    # Case 2: replicated 2-D mask + multi-step grid (BB=8 divides B=16 -> 2 steps,
    # exercising the v7x two-TensorCore path with no padding / ragged blocks).
    B2 = 16
    obs2 = jax.random.normal(k_extra, (B2, num_agent, obs_size), jnp.float32)
    action2 = jax.random.normal(jax.random.fold_in(k_extra, 1),
                                (B2, num_action, action_size), jnp.float32)
    mask2 = (jax.random.uniform(jax.random.fold_in(k_extra, 2),
                                (num_agent, num_action)) > 0.3).astype(jnp.float32)
    out2 = jax.block_until_ready(q_attention(obs2, action2, mask2, params))
    ref2 = _reference(obs2, action2, mask2, params)
    assert out2.shape == (B2, num_agent, num_action)
    assert jnp.allclose(out2, ref2, atol=ATOL, rtol=RTOL), "mismatch (2-D mask)"

    print("KERNEL_OK")
</pallas_src>

<mosaic_0001>
module attributes {stable_mosaic.version = 11 : i64} {
  func.func @_q_attention_kernel(%arg0: i32, %arg1: memref<2x8x16xf32, #tpu.memory_space<vmem>>, %arg2: memref<2x8x12xf32, #tpu.memory_space<vmem>>, %arg3: memref<2x8x8xf32, #tpu.memory_space<vmem>>, %arg4: memref<16x32xf32, #tpu.memory_space<vmem>>, %arg5: memref<1x32xf32, #tpu.memory_space<vmem>>, %arg6: memref<12x98xf32, #tpu.memory_space<vmem>>, %arg7: memref<1x98xf32, #tpu.memory_space<vmem>>, %arg8: memref<2x8x8xf32, #tpu.memory_space<vmem>>) attributes {dimension_semantics = [#tpu.dimension_semantics<parallel>], iteration_bounds = array<i64: 1>, scalar_prefetch = 0 : i64, scratch_operands = 0 : i64, tpu.core_type = #tpu.core_type<tc>, window_params = [{transform_indices = @transform_0, window_bounds = array<i64: 2, 8, 16>}, {transform_indices = @transform_1, window_bounds = array<i64: 2, 8, 12>}, {transform_indices = @transform_2, window_bounds = array<i64: 2, 8, 8>}, {pipeline_mode = #tpu.pipeline_mode<synchronous>, transform_indices = @transform_3, window_bounds = array<i64: 16, 32>}, {pipeline_mode = #tpu.pipeline_mode<synchronous>, transform_indices = @transform_4, window_bounds = array<i64: 1, 32>}, {pipeline_mode = #tpu.pipeline_mode<synchronous>, transform_indices = @transform_5, window_bounds = array<i64: 12, 98>}, {pipeline_mode = #tpu.pipeline_mode<synchronous>, transform_indices = @transform_6, window_bounds = array<i64: 1, 98>}, {transform_indices = @transform_7, window_bounds = array<i64: 2, 8, 8>}]} {
    %c0 = arith.constant 0 : index
    %c0_0 = arith.constant 0 : index
    %c0_1 = arith.constant 0 : index
    %0 = vector.load %arg1[%c0, %c0_0, %c0_1] : memref<2x8x16xf32, #tpu.memory_space<vmem>>, vector<2x8x16xf32>
    %1 = vector.shape_cast %0 : vector<2x8x16xf32> to vector<16x16xf32>
    %c0_2 = arith.constant 0 : index
    %c0_3 = arith.constant 0 : index
    %c0_4 = arith.constant 0 : index
    %2 = vector.load %arg2[%c0_2, %c0_3, %c0_4] : memref<2x8x12xf32, #tpu.memory_space<vmem>>, vector<2x8x12xf32>
    %3 = vector.shape_cast %2 : vector<2x8x12xf32> to vector<16x12xf32>
    %c0_5 = arith.constant 0 : index
    %c0_6 = arith.constant 0 : index
    %4 = vector.load %arg4[%c0_5, %c0_6] : memref<16x32xf32, #tpu.memory_space<vmem>>, vector<16x32xf32>
    %cst = arith.constant dense<0.000000e+00> : vector<16x32xf32>
    %5 = tpu.matmul %1, %4, %cst {dimension_numbers = #tpu.dot_dimension_numbers<[1], [0], [0], [1], [0, 0, 1, 1], [], []>} : vector<16x16xf32>, vector<16x32xf32>, vector<16x32xf32> -> vector<16x32xf32>
    %c0_7 = arith.constant 0 : index
    %c0_8 = arith.constant 0 : index
    %6 = vector.load %arg5[%c0_7, %c0_8] : memref<1x32xf32, #tpu.memory_space<vmem>>, vector<1x32xf32>
    %7 = vector.broadcast %6 : vector<1x32xf32> to vector<16x32xf32>
    %8 = arith.addf %5, %7 : vector<16x32xf32>
    %9 = vector.shape_cast %8 : vector<16x32xf32> to vector<2x8x32xf32>
    %c0_9 = arith.constant 0 : index
    %c0_10 = arith.constant 0 : index
    %10 = vector.load %arg6[%c0_9, %c0_10] : memref<12x98xf32, #tpu.memory_space<vmem>>, vector<12x98xf32>
    %cst_11 = arith.constant dense<0.000000e+00> : vector<16x98xf32>
    %11 = tpu.matmul %3, %10, %cst_11 {dimension_numbers = #tpu.dot_dimension_numbers<[1], [0], [0], [1], [0, 0, 1, 1], [], []>} : vector<16x12xf32>, vector<12x98xf32>, vector<16x98xf32> -> vector<16x98xf32>
    %c0_12 = arith.constant 0 : index
    %c0_13 = arith.constant 0 : index
    %12 = vector.load %arg7[%c0_12, %c0_13] : memref<1x98xf32, #tpu.memory_space<vmem>>, vector<1x98xf32>
    %13 = vector.broadcast %12 : vector<1x98xf32> to vector<16x98xf32>
    %14 = arith.addf %11, %13 : vector<16x98xf32>
    %15 = vector.shape_cast %14 : vector<16x98xf32> to vector<2x8x98xf32>
    %16 = vector.extract_strided_slice %15 {offsets = [0, 0, 0], sizes = [2, 8, 32], strides = [1, 1, 1]} : vector<2x8x98xf32> to vector<2x8x32xf32>
    %17 = vector.extract_strided_slice %15 {offsets = [0, 0, 32], sizes = [2, 8, 33], strides = [1, 1, 1]} : vector<2x8x98xf32> to vector<2x8x33xf32>
    %18 = vector.extract_strided_slice %15 {offsets = [0, 0, 65], sizes = [2, 8, 33], strides = [1, 1, 1]} : vector<2x8x98xf32> to vector<2x8x33xf32>
    "tpu.trace_start"() <{level = 10 : i32, message = "bah,bnh->ban"}> : () -> ()
    %cst_14 = arith.constant dense<0.000000e+00> : vector<2x8x8xf32>
    %19 = tpu.matmul %9, %16, %cst_14 {dimension_numbers = #tpu.dot_dimension_numbers<[2], [2], [1], [1], [0, 0, 0, 1, 1, 1], [0], [0]>} : vector<2x8x32xf32>, vector<2x8x32xf32>, vector<2x8x8xf32> -> vector<2x8x8xf32>
    "tpu.trace_stop"() : () -> ()
    %cst_15 = arith.constant dense<0xFF800000> : vector<2x8xf32>
    %20 = vector.multi_reduction <maximumf>, %19, %cst_15 [2] : vector<2x8x8xf32> to vector<2x8xf32>
    %21 = vector.shape_cast %20 : vector<2x8xf32> to vector<2x8x1xf32>
    %22 = vector.broadcast %21 : vector<2x8x1xf32> to vector<2x8x8xf32>
    %23 = arith.subf %19, %22 : vector<2x8x8xf32>
    %24 = math.exp %23 : vector<2x8x8xf32>
    %cst_16 = arith.constant dense<0.000000e+00> : vector<2x8xf32>
    %25 = vector.multi_reduction <add>, %24, %cst_16 [2] : vector<2x8x8xf32> to vector<2x8xf32>
    %26 = vector.shape_cast %25 : vector<2x8xf32> to vector<2x8x1xf32>
    "tpu.trace_start"() <{level = 10 : i32, message = "ban,bnj->baj"}> : () -> ()
    %cst_17 = arith.constant dense<0.000000e+00> : vector<2x8x33xf32>
    %27 = tpu.matmul %24, %17, %cst_17 {dimension_numbers = #tpu.dot_dimension_numbers<[2], [1], [1], [2], [0, 0, 0, 1, 1, 2], [0], [0]>} : vector<2x8x8xf32>, vector<2x8x33xf32>, vector<2x8x33xf32> -> vector<2x8x33xf32>
    "tpu.trace_stop"() : () -> ()
    %28 = tpu.reciprocal %26 : vector<2x8x1xf32> -> vector<2x8x1xf32>
    %29 = vector.broadcast %28 : vector<2x8x1xf32> to vector<2x8x33xf32>
    %30 = arith.mulf %27, %29 : vector<2x8x33xf32>
    "tpu.trace_start"() <{level = 10 : i32, message = "baj,bnj->ban"}> : () -> ()
    %cst_18 = arith.constant dense<0.000000e+00> : vector<2x8x8xf32>
    %31 = tpu.matmul %30, %18, %cst_18 {dimension_numbers = #tpu.dot_dimension_numbers<[2], [2], [1], [1], [0, 0, 0, 1, 1, 1], [0], [0]>} : vector<2x8x33xf32>, vector<2x8x33xf32>, vector<2x8x8xf32> -> vector<2x8x8xf32>
    "tpu.trace_stop"() : () -> ()
    %c0_19 = arith.constant 0 : index
    %c0_20 = arith.constant 0 : index
    %c0_21 = arith.constant 0 : index
    %32 = vector.load %arg3[%c0_19, %c0_20, %c0_21] : memref<2x8x8xf32, #tpu.memory_space<vmem>>, vector<2x8x8xf32>
    %cst_22 = arith.constant 0.000000e+00 : f32
    %33 = vector.broadcast %cst_22 : f32 to vector<2x8x8xf32>
    %34 = arith.cmpf oeq, %32, %33 : vector<2x8x8xf32>
    %cst_23 = arith.constant -1.000000e+08 : f32
    %35 = vector.broadcast %cst_23 : f32 to vector<2x8x8xf32>
    %36 = arith.select %34, %35, %31 : vector<2x8x8xi1>, vector<2x8x8xf32>
    %cst_24 = arith.constant 0.000000e+00 : f32
    %37 = vector.broadcast %cst_24 : f32 to vector<2x8x8xf32>
    %38 = arith.maximumf %36, %37 : vector<2x8x8xf32>
    %39 = math.absf %36 : vector<2x8x8xf32>
    %cst_25 = arith.constant 0.000000e+00 : f32
    %40 = vector.broadcast %cst_25 : f32 to vector<2x8x8xf32>
    %41 = arith.subf %40, %39 : vector<2x8x8xf32>
    %42 = math.exp %41 : vector<2x8x8xf32>
    %cst_26 = arith.constant 1.000000e+00 : f32
    %43 = vector.broadcast %cst_26 : f32 to vector<2x8x8xf32>
    %44 = arith.addf %43, %42 : vector<2x8x8xf32>
    %45 = math.log %44 : vector<2x8x8xf32>
    %46 = arith.addf %38, %45 : vector<2x8x8xf32>
    %c0_27 = arith.constant 0 : index
    %c0_28 = arith.constant 0 : index
    %c0_29 = arith.constant 0 : index
    %47 = vector.load %arg8[%c0_27, %c0_28, %c0_29] : memref<2x8x8xf32, #tpu.memory_space<vmem>>, vector<2x8x8xf32>
    tpu.vector_store %arg8[%c0_27, %c0_28, %c0_29], %46 {strides = array<i32>} : memref<2x8x8xf32, #tpu.memory_space<vmem>>, vector<2x8x8xf32>,
    return
  }
  func.func @transform_0(%arg0: i32) -> (i32, i32, i32) {
    %c0_i32 = arith.constant 0 : i32
    %c0_i32_0 = arith.constant 0 : i32
    %c0_i32_1 = arith.constant 0 : i32
    return %arg0, %c0_i32, %c0_i32_0 : i32, i32, i32
  }
  func.func @transform_1(%arg0: i32) -> (i32, i32, i32) {
    %c0_i32 = arith.constant 0 : i32
    %c0_i32_0 = arith.constant 0 : i32
    %c0_i32_1 = arith.constant 0 : i32
    return %arg0, %c0_i32, %c0_i32_0 : i32, i32, i32
  }
  func.func @transform_2(%arg0: i32) -> (i32, i32, i32) {
    %c0_i32 = arith.constant 0 : i32
    %c0_i32_0 = arith.constant 0 : i32
    %c0_i32_1 = arith.constant 0 : i32
    return %arg0, %c0_i32, %c0_i32_0 : i32, i32, i32
  }
  func.func @transform_3(%arg0: i32) -> (i32, i32) {
    %c0_i32 = arith.constant 0 : i32
    %c0_i32_0 = arith.constant 0 : i32
    %c0_i32_1 = arith.constant 0 : i32
    return %c0_i32, %c0_i32_0 : i32, i32
  }
  func.func @transform_4(%arg0: i32) -> (i32, i32) {
    %c0_i32 = arith.constant 0 : i32
    %c0_i32_0 = arith.constant 0 : i32
    %c0_i32_1 = arith.constant 0 : i32
    return %c0_i32, %c0_i32_0 : i32, i32
  }
  func.func @transform_5(%arg0: i32) -> (i32, i32) {
    %c0_i32 = arith.constant 0 : i32
    %c0_i32_0 = arith.constant 0 : i32
    %c0_i32_1 = arith.constant 0 : i32
    return %c0_i32, %c0_i32_0 : i32, i32
  }
  func.func @transform_6(%arg0: i32) -> (i32, i32) {
    %c0_i32 = arith.constant 0 : i32
    %c0_i32_0 = arith.constant 0 : i32
    %c0_i32_1 = arith.constant 0 : i32
    return %c0_i32, %c0_i32_0 : i32, i32
  }
  func.func @transform_7(%arg0: i32) -> (i32, i32, i32) {
    %c0_i32 = arith.constant 0 : i32
    %c0_i32_0 = arith.constant 0 : i32
    %c0_i32_1 = arith.constant 0 : i32
    return %arg0, %c0_i32, %c0_i32_0 : i32, i32, i32
  }
}

</mosaic_0001>

<llo_original>
// kernel: tpu_custom_call.1
$region0: #{tpu_custom_call.1}
  #allocation0 [shape = 'u32[]', space=smem, size = 0x4, offset = 0x4, fixed_abs, tag = 'smem constant byte address 0x4 - core index']
  #allocation1 [shape = 'u32[144,128]{1,0:T(1,128)}', space=vmem, size = 0x12000, scoped, tag = 'internal scratch']
  %s0 = inlined_call_operand.hbm [shape: f32[2,8,16], index: 0, kind: input, shape index: {}]
  %s1 = inlined_call_operand.hbm [shape: f32[2,8,12], index: 1, kind: input, shape index: {}]
  %s2 = inlined_call_operand.hbm [shape: f32[2,8,8], index: 2, kind: input, shape index: {}]
  %s3 = inlined_call_operand.hbm [shape: f32[16,32], index: 3, kind: input, shape index: {}]
  %s4 = inlined_call_operand.vmem [shape: f32[1,32], index: 4, kind: input, shape index: {}]
  %s5 = inlined_call_operand.hbm [shape: f32[12,98], index: 5, kind: input, shape index: {}]
  %s6 = inlined_call_operand.vmem [shape: f32[1,98], index: 6, kind: input, shape index: {}]
  %s7 = inlined_call_operand.hbm [shape: f32[2,8,8], index: 7, kind: output, shape index: {}]
  %s8 = sld [smem:[#allocation0]]
  $region58: #{tpu_custom_call.1} parent=0
    _
  %s10 = ssub.s32 1, %s8
  %s11 = scalar_select 0, %s10, %s8
  $region1: #{tpu_custom_call.1} parent=0
    #allocation2 [shape = 'u8[8192]{0}', space=vmem, size = 0x2000, scoped, tag = 'input window, operand 0, single buffered']
    #allocation3 [shape = 's32[1]{0}', space=sflag, size = 0x4, scoped, tag = 'scoped memory for tpu_custom_call.1']
    #allocation4 [shape = 's32[1]{0}', space=sflag, size = 0x4, scoped, tag = 'scoped memory for tpu_custom_call.1']
    #allocation5 [shape = 'u8[8192]{0}', space=vmem, size = 0x2000, scoped, tag = 'input window, operand 1, single buffered']
    #allocation6 [shape = 's32[1]{0}', space=sflag, size = 0x4, scoped, tag = 'scoped memory for tpu_custom_call.1']
    #allocation7 [shape = 'u8[8192]{0}', space=vmem, size = 0x2000, scoped, tag = 'input window, operand 2, single buffered']
    #allocation8 [shape = 'u8[8192]{0}', space=vmem, size = 0x2000, scoped, tag = 'input window, operand 3, single buffered']
    #allocation9 [shape = 's32[1]{0}', space=sflag, size = 0x4, scoped, tag = 'scoped memory for tpu_custom_call.1']
    #allocation10 [shape = 'u8[8192]{0}', space=vmem, size = 0x2000, scoped, tag = 'input window, operand 5, single buffered']
    #allocation11 [shape = 'u8[8192]{0}', space=vmem, size = 0x2000, scoped, tag = 'output window, operand 0, single buffered']
    %12 = vsyncpa [#allocation3], 0
    %13 = vsyncpa [#allocation6], 0
    %14 = vsyncpa [#allocation9], 0
    %15 = vsyncpa [#allocation4], 0
    // Predicated region
    $region2: #{tpu_custom_call.1} parent=1 // pred_check
      _
    $region3: #{tpu_custom_call.1} parent=1 // pred_check_branch
      %17 = sbr.rel (0) target = $region5
    $region4: #{tpu_custom_call.1} parent=1 // pred_region
      %s19 = ssub.s32 256, 256
      %20 = vsyncadd [#allocation3], %s19
      %s21 = sshll.u32 [#allocation2], 4
      %s22 = int_to_ptr.vmem [resolvable:$true] %s21
      %27 = dma.hbm_to_vmem [thread:$0]  %s0, 256, %s22, [#allocation3], 128, 128, 8
    $region5: #{tpu_custom_call.1} parent=1 // pred_fallthru
      _
    // Predicated region
    $region6: #{tpu_custom_call.1} parent=1 // pred_check
      _
    $region7: #{tpu_custom_call.1} parent=1 // pred_check_branch
      %29 = sbr.rel (0) target = $region9
    $region8: #{tpu_custom_call.1} parent=1 // pred_region
      %s31 = ssub.s32 256, 256
      %32 = vsyncadd [#allocation6], %s31
      %s33 = sshll.u32 [#allocation5], 4
      %s34 = int_to_ptr.vmem [resolvable:$true] %s33
      %39 = dma.hbm_to_vmem [thread:$0]  %s1, 256, %s34, [#allocation6], 128, 128, 8
    $region9: #{tpu_custom_call.1} parent=1 // pred_fallthru
      _
    // Predicated region
    $region10: #{tpu_custom_call.1} parent=1 // pred_check
      _
    $region11: #{tpu_custom_call.1} parent=1 // pred_check_branch
      %41 = sbr.rel (0) target = $region13
    $region12: #{tpu_custom_call.1} parent=1 // pred_region
      %s43 = ssub.s32 256, 256
      %44 = vsyncadd [#allocation6], %s43
      %s45 = sshll.u32 [#allocation7], 4
      %s46 = int_to_ptr.vmem [resolvable:$true] %s45
      %51 = dma.hbm_to_vmem [thread:$0]  %s2, 256, %s46, [#allocation6], 128, 128, 8
    $region13: #{tpu_custom_call.1} parent=1 // pred_fallthru
      _
    // Predicated region
    $region14: #{tpu_custom_call.1} parent=1 // pred_check
      _
    $region15: #{tpu_custom_call.1} parent=1 // pred_check_branch
      %53 = sbr.rel (0) target = $region17
    $region16: #{tpu_custom_call.1} parent=1 // pred_region
      %s55 = ssub.s32 256, 256
      %56 = vsyncadd [#allocation9], %s55
      %s57 = sshll.u32 [#allocation8], 4
      %s58 = int_to_ptr.vmem [resolvable:$true] %s57
      %63 = dma.hbm_to_vmem [thread:$0]  %s3, 256, %s58, [#allocation9], 128, 128, 8
    $region17: #{tpu_custom_call.1} parent=1 // pred_fallthru
      _
    // Predicated region
    $region18: #{tpu_custom_call.1} parent=1 // pred_check
      _
    $region19: #{tpu_custom_call.1} parent=1 // pred_check_branch
      %65 = sbr.rel (0) target = $region21
    $region20: #{tpu_custom_call.1} parent=1 // pred_region
      _
    $region21: #{tpu_custom_call.1} parent=1 // pred_fallthru
      _
    // Predicated region
    $region22: #{tpu_custom_call.1} parent=1 // pred_check
      _
    $region23: #{tpu_custom_call.1} parent=1 // pred_check_branch
      %67 = sbr.rel (0) target = $region25
    $region24: #{tpu_custom_call.1} parent=1 // pred_region
      %s69 = ssub.s32 256, 256
      %70 = vsyncadd [#allocation9], %s69
      %s71 = sshll.u32 [#allocation10], 4
      %s72 = int_to_ptr.vmem [resolvable:$true] %s71
      %77 = dma.hbm_to_vmem [thread:$0]  %s5, 256, %s72, [#allocation9], 128, 128, 8
    $region25: #{tpu_custom_call.1} parent=1 // pred_fallthru
      _
    // Predicated region
    $region26: #{tpu_custom_call.1} parent=1 // pred_check
      _
    $region27: #{tpu_custom_call.1} parent=1 // pred_check_branch
      %79 = sbr.rel (0) target = $region29
    $region28: #{tpu_custom_call.1} parent=1 // pred_region
      _
    $region29: #{tpu_custom_call.1} parent=1 // pred_fallthru
      _
    // Predicated region
    $region30: #{tpu_custom_call.1} parent=1 // pred_check
      _
    $region31: #{tpu_custom_call.1} parent=1 // pred_check_branch
      %81 = sbr.rel (0) target = $region33
    $region32: #{tpu_custom_call.1} parent=1 // pred_region
      %82 = dma.done [#allocation3], 256
    $region33: #{tpu_custom_call.1} parent=1 // pred_fallthru
      _
    // Predicated region
    $region34: #{tpu_custom_call.1} parent=1 // pred_check
      _
    $region35: #{tpu_custom_call.1} parent=1 // pred_check_branch
      %84 = sbr.rel (0) target = $region37
    $region36: #{tpu_custom_call.1} parent=1 // pred_region
      %85 = dma.done [#allocation6], 256
    $region37: #{tpu_custom_call.1} parent=1 // pred_fallthru
      _
    // Predicated region
    $region38: #{tpu_custom_call.1} parent=1 // pred_check
      _
    $region39: #{tpu_custom_call.1} parent=1 // pred_check_branch
      %87 = sbr.rel (0) target = $region41
    $region40: #{tpu_custom_call.1} parent=1 // pred_region
      %88 = dma.done [#allocation6], 256
    $region41: #{tpu_custom_call.1} parent=1 // pred_fallthru
      _
    // Predicated region
    $region42: #{tpu_custom_call.1} parent=1 // pred_check
      _
    $region43: #{tpu_custom_call.1} parent=1 // pred_check_branch
      %90 = sbr.rel (0) target = $region45
    $region44: #{tpu_custom_call.1} parent=1 // pred_region
      %91 = dma.done [#allocation9], 256
    $region45: #{tpu_custom_call.1} parent=1 // pred_fallthru
      _
    // Predicated region
    $region46: #{tpu_custom_call.1} parent=1 // pred_check
      _
    $region47: #{tpu_custom_call.1} parent=1 // pred_check_branch
      %93 = sbr.rel (0) target = $region49
    $region48: #{tpu_custom_call.1} parent=1 // pred_region
      %94 = dma.done [#allocation9], 256
    $region49: #{tpu_custom_call.1} parent=1 // pred_fallthru
      _
    %v95 = vld [vmem:[#allocation2] sm:$0xff]
    %v96 = vld [vmem:[#allocation2 + $0x8] sm:$0xff]
    %v97 = vld [vmem:[#allocation5] sm:$0xff]
    %v98 = vld [vmem:[#allocation5 + $0x8] sm:$0xff]
    %v99 = vld [vmem:[#allocation8] sm:$0xff]
    %v100 = vld [vmem:[#allocation8 + $0x8] sm:$0xff]
    %v101 = vld [vmem:[%s4] sm:$0x1]
    %v103 = vlaneseq
    %v104 = vshrl.u32 %v103, 7
    %v105 = vsub.s32 0, %v104
    %v106 = vrot.slane %v101, %v105
    %vm108 = vcmask 130048
    %v110 = vsel %vm108, %v95, 0
    %v113 = vsel %vm108, %v96, 0
    %115 = vmatprep.subr.mxu0 0.0
    %116 = vmatpush1.msra.mxu0 0.0
    %117 = vmatprep.subr.mxu0 0.0
    %118 = vmatpush1.msra.mxu0 0.0
    %119 = vmatprep.subr.mxu0 0.0
    %120 = vmatpush1.msra.mxu0 0.0
    %121 = vmatprep.subr.mxu0 0.0
    %122 = vmatpush1.msra.mxu0 0.0
    %123 = vmatprep.subr.mxu0 0.0
    %124 = vmatpush1.msra.mxu0 0.0
    %125 = vmatprep.subr.mxu0 0.0
    %126 = vmatpush1.msra.mxu0 0.0
    %127 = vmatprep.subr.mxu0 0.0
    %128 = vmatpush1.msra.mxu0 0.0
    %129 = vmatprep.subr.mxu0 0.0
    %130 = vmatpush1.msra.mxu0 0.0
    %131 = vmatprep.subr.mxu0 0.0
    %132 = vmatpush1.msra.mxu0 0.0
    %133 = vmatprep.subr.mxu0 0.0
    %134 = vmatpush1.msra.mxu0 0.0
    %135 = vmatprep.subr.mxu0 0.0
    %136 = vmatpush1.msra.mxu0 0.0
    %137 = vmatprep.subr.mxu0 0.0
    %138 = vmatpush1.msra.mxu0 0.0
    %139 = vmatprep.subr.mxu0 0.0
    %140 = vmatpush1.msra.mxu0 0.0
    %141 = vmatprep.subr.mxu0 0.0
    %142 = vmatpush1.msra.mxu0 0.0
    %143 = vmatprep.subr.mxu0 0.0
    %144 = vmatpush1.msra.mxu0 %v100
    %145 = vmatprep.subr.mxu0 0.0
    %146 = vmatpush1.msra.mxu0 %v99
    %147 = vmatprep.subr.mxu0 0.0
    %148 = vmatpush2.msra.mxu0 0.0
    %149 = vmatprep.subr.mxu0 0.0
    %150 = vmatpush2.msra.mxu0 0.0
    %151 = vmatprep.subr.mxu0 0.0
    %152 = vmatpush2.msra.mxu0 0.0
    %153 = vmatprep.subr.mxu0 0.0
    %154 = vmatpush2.msra.mxu0 0.0
    %155 = vmatprep.subr.mxu0 0.0
    %156 = vmatpush2.msra.mxu0 0.0
    %157 = vmatprep.subr.mxu0 0.0
    %158 = vmatpush2.msra.mxu0 0.0
    %159 = vmatprep.subr.mxu0 0.0
    %160 = vmatpush2.msra.mxu0 0.0
    %161 = vmatprep.subr.mxu0 0.0
    %162 = vmatpush2.msra.mxu0 0.0
    %163 = vmatprep.subr.mxu0 0.0
    %164 = vmatpush2.msra.mxu0 0.0
    %165 = vmatprep.subr.mxu0 0.0
    %166 = vmatpush2.msra.mxu0 0.0
    %167 = vmatprep.subr.mxu0 0.0
    %168 = vmatpush2.msra.mxu0 0.0
    %169 = vmatprep.subr.mxu0 0.0
    %170 = vmatpush2.msra.mxu0 0.0
    %171 = vmatprep.subr.mxu0 0.0
    %172 = vmatpush2.msra.mxu0 0.0
    %173 = vmatprep.subr.mxu0 0.0
    %174 = vmatpush2.msra.mxu0 0.0
    %175 = vmatprep.subr.mxu0 0.0
    %176 = vmatpush2.msra.mxu0 0.0
    %177 = vmatprep.subr.mxu0 0.0
    %178 = vmatpush2.msra.mxu0 0.0
    %179 = vmatprep.mubr.f32.mxu0 0.0
    %180 = vmatmul.mubr.f32.gmra.mxu0 %v110
    %v181 = vpop.f32.mrf.mxu0
    %v182 = vadd.f32 %v106, %v181
    %v183 = vpop.f32.mrf.mxu0
    %184 = vmatprep.mubr.f32.mxu0 0.0
    %185 = vmatmul.mubr.f32.gmra.mxu0 %v113
    %v186 = vpop.f32.mrf.mxu0
    %v187 = vadd.f32 %v106, %v186
    %v188 = vpop.f32.mrf.mxu0
    %189 = vdwg.mxu0
    %v190 = vld [vmem:[#allocation10] sm:$0xff]
    %v191 = vld [vmem:[#allocation10 + $0x8] sm:$0xf]
    %v192 = vld [vmem:[%s6] sm:$0x1]
    %v194 = vlaneseq
    %v195 = vshrl.u32 %v194, 7
    %v196 = vsub.s32 0, %v195
    %v197 = vrot.slane %v192, %v196
    %vm199 = vcmask 97280
    %v201 = vsel %vm199, %v97, 0
    %v204 = vsel %vm199, %v98, 0
    %vm206 = vcmask 1043456
    %v208 = vsel %vm206, %v191, 0
    %210 = vmatprep.subr.mxu0 0.0
    %211 = vmatpush1.msra.mxu0 0.0
    %212 = vmatprep.subr.mxu0 0.0
    %213 = vmatpush1.msra.mxu0 0.0
    %214 = vmatprep.subr.mxu0 0.0
    %215 = vmatpush1.msra.mxu0 0.0
    %216 = vmatprep.subr.mxu0 0.0
    %217 = vmatpush1.msra.mxu0 0.0
    %218 = vmatprep.subr.mxu0 0.0
    %219 = vmatpush1.msra.mxu0 0.0
    %220 = vmatprep.subr.mxu0 0.0
    %221 = vmatpush1.msra.mxu0 0.0
    %222 = vmatprep.subr.mxu0 0.0
    %223 = vmatpush1.msra.mxu0 0.0
    %224 = vmatprep.subr.mxu0 0.0
    %225 = vmatpush1.msra.mxu0 0.0
    %226 = vmatprep.subr.mxu0 0.0
    %227 = vmatpush1.msra.mxu0 0.0
    %228 = vmatprep.subr.mxu0 0.0
    %229 = vmatpush1.msra.mxu0 0.0
    %230 = vmatprep.subr.mxu0 0.0
    %231 = vmatpush1.msra.mxu0 0.0
    %232 = vmatprep.subr.mxu0 0.0
    %233 = vmatpush1.msra.mxu0 0.0
    %234 = vmatprep.subr.mxu0 0.0
    %235 = vmatpush1.msra.mxu0 0.0
    %236 = vmatprep.subr.mxu0 0.0
    %237 = vmatpush1.msra.mxu0 0.0
    %238 = vmatprep.subr.mxu0 0.0
    %239 = vmatpush1.msra.mxu0 %v208
    %240 = vmatprep.subr.mxu0 0.0
    %241 = vmatpush1.msra.mxu0 %v190
    %242 = vmatprep.subr.mxu0 0.0
    %243 = vmatpush2.msra.mxu0 0.0
    %244 = vmatprep.subr.mxu0 0.0
    %245 = vmatpush2.msra.mxu0 0.0
    %246 = vmatprep.subr.mxu0 0.0
    %247 = vmatpush2.msra.mxu0 0.0
    %248 = vmatprep.subr.mxu0 0.0
    %249 = vmatpush2.msra.mxu0 0.0
    %250 = vmatprep.subr.mxu0 0.0
    %251 = vmatpush2.msra.mxu0 0.0
    %252 = vmatprep.subr.mxu0 0.0
    %253 = vmatpush2.msra.mxu0 0.0
    %254 = vmatprep.subr.mxu0 0.0
    %255 = vmatpush2.msra.mxu0 0.0
    %256 = vmatprep.subr.mxu0 0.0
    %257 = vmatpush2.msra.mxu0 0.0
    %258 = vmatprep.subr.mxu0 0.0
    %259 = vmatpush2.msra.mxu0 0.0
    %260 = vmatprep.subr.mxu0 0.0
    %261 = vmatpush2.msra.mxu0 0.0
    %262 = vmatprep.subr.mxu0 0.0
    %263 = vmatpush2.msra.mxu0 0.0
    %264 = vmatprep.subr.mxu0 0.0
    %265 = vmatpush2.msra.mxu0 0.0
    %266 = vmatprep.subr.mxu0 0.0
    %267 = vmatpush2.msra.mxu0 0.0
    %268 = vmatprep.subr.mxu0 0.0
    %269 = vmatpush2.msra.mxu0 0.0
    %270 = vmatprep.subr.mxu0 0.0
    %271 = vmatpush2.msra.mxu0 0.0
    %272 = vmatprep.subr.mxu0 0.0
    %273 = vmatpush2.msra.mxu0 0.0
    %274 = vmatprep.mubr.f32.mxu0 0.0
    %275 = vmatmul.mubr.f32.gmra.mxu0 %v201
    %v276 = vpop.f32.mrf.mxu0
    %v277 = vadd.f32 %v197, %v276
    %v278 = vpop.f32.mrf.mxu0
    %279 = vmatprep.mubr.f32.mxu0 0.0
    %280 = vmatmul.mubr.f32.gmra.mxu0 %v204
    %v281 = vpop.f32.mrf.mxu0
    %v282 = vadd.f32 %v197, %v281
    %v283 = vpop.f32.mrf.mxu0
    %284 = vdwg.mxu0
    %vm285 = vcmask 261120
    %v287 = vsel %vm285, %v182, 0
    %v290 = vsel %vm285, %v277, 0
    %292 = vmatprep.subr.mxu0 0.0
    %293 = vmatpush1.xpose.msra.mxu0 0.0
    %294 = vmatprep.subr.mxu0 0.0
    %295 = vmatpush1.xpose.msra.mxu0 0.0
    %296 = vmatprep.subr.mxu0 0.0
    %297 = vmatpush1.xpose.msra.mxu0 0.0
    %298 = vmatprep.subr.mxu0 0.0
    %299 = vmatpush1.xpose.msra.mxu0 0.0
    %300 = vmatprep.subr.mxu0 0.0
    %301 = vmatpush1.xpose.msra.mxu0 0.0
    %302 = vmatprep.subr.mxu0 0.0
    %303 = vmatpush1.xpose.msra.mxu0 0.0
    %304 = vmatprep.subr.mxu0 0.0
    %305 = vmatpush1.xpose.msra.mxu0 0.0
    %306 = vmatprep.subr.mxu0 0.0
    %307 = vmatpush1.xpose.msra.mxu0 0.0
    %308 = vmatprep.subr.mxu0 0.0
    %309 = vmatpush1.xpose.msra.mxu0 0.0
    %310 = vmatprep.subr.mxu0 0.0
    %311 = vmatpush1.xpose.msra.mxu0 0.0
    %312 = vmatprep.subr.mxu0 0.0
    %313 = vmatpush1.xpose.msra.mxu0 0.0
    %314 = vmatprep.subr.mxu0 0.0
    %315 = vmatpush1.xpose.msra.mxu0 0.0
    %316 = vmatprep.subr.mxu0 0.0
    %317 = vmatpush1.xpose.msra.mxu0 0.0
    %318 = vmatprep.subr.mxu0 0.0
    %319 = vmatpush1.xpose.msra.mxu0 0.0
    %320 = vmatprep.subr.mxu0 0.0
    %321 = vmatpush1.xpose.msra.mxu0 0.0
    %322 = vmatprep.subr.mxu0 0.0
    %323 = vmatpush1.xpose.msra.mxu0 %v290
    %324 = vmatprep.subr.mxu0 0.0
    %325 = vmatpush2.xpose.msra.mxu0 0.0
    %326 = vmatprep.subr.mxu0 0.0
    %327 = vmatpush2.xpose.msra.mxu0 0.0
    %328 = vmatprep.subr.mxu0 0.0
    %329 = vmatpush2.xpose.msra.mxu0 0.0
    %330 = vmatprep.subr.mxu0 0.0
    %331 = vmatpush2.xpose.msra.mxu0 0.0
    %332 = vmatprep.subr.mxu0 0.0
    %333 = vmatpush2.xpose.msra.mxu0 0.0
    %334 = vmatprep.subr.mxu0 0.0
    %335 = vmatpush2.xpose.msra.mxu0 0.0
    %336 = vmatprep.subr.mxu0 0.0
    %337 = vmatpush2.xpose.msra.mxu0 0.0
    %338 = vmatprep.subr.mxu0 0.0
    %339 = vmatpush2.xpose.msra.mxu0 0.0
    %340 = vmatprep.subr.mxu0 0.0
    %341 = vmatpush2.xpose.msra.mxu0 0.0
    %342 = vmatprep.subr.mxu0 0.0
    %343 = vmatpush2.xpose.msra.mxu0 0.0
    %344 = vmatprep.subr.mxu0 0.0
    %345 = vmatpush2.xpose.msra.mxu0 0.0
    %346 = vmatprep.subr.mxu0 0.0
    %347 = vmatpush2.xpose.msra.mxu0 0.0
    %348 = vmatprep.subr.mxu0 0.0
    %349 = vmatpush2.xpose.msra.mxu0 0.0
    %350 = vmatprep.subr.mxu0 0.0
    %351 = vmatpush2.xpose.msra.mxu0 0.0
    %352 = vmatprep.subr.mxu0 0.0
    %353 = vmatpush2.xpose.msra.mxu0 0.0
    %354 = vmatprep.subr.mxu0 0.0
    %355 = vmatpush2.xpose.msra.mxu0 0.0
    %356 = vmatprep.mubr.f32.mxu0 0.0
    %357 = vmatmul.mubr.f32.gmra.mxu0 %v287
    %v358 = vpop.f32.mrf.mxu0
    %v359 = vadd.f32 0.0, %v358
    %v360 = vpop.f32.mrf.mxu0
    %361 = vdwg.mxu0
    %v363 = vsel %vm285, %v187, 0
    %v366 = vsel %vm285, %v282, 0
    %368 = vmatprep.subr.mxu0 0.0
    %369 = vmatpush1.xpose.msra.mxu0 0.0
    %370 = vmatprep.subr.mxu0 0.0
    %371 = vmatpush1.xpose.msra.mxu0 0.0
    %372 = vmatprep.subr.mxu0 0.0
    %373 = vmatpush1.xpose.msra.mxu0 0.0
    %374 = vmatprep.subr.mxu0 0.0
    %375 = vmatpush1.xpose.msra.mxu0 0.0
    %376 = vmatprep.subr.mxu0 0.0
    %377 = vmatpush1.xpose.msra.mxu0 0.0
    %378 = vmatprep.subr.mxu0 0.0
    %379 = vmatpush1.xpose.msra.mxu0 0.0
    %380 = vmatprep.subr.mxu0 0.0
    %381 = vmatpush1.xpose.msra.mxu0 0.0
    %382 = vmatprep.subr.mxu0 0.0
    %383 = vmatpush1.xpose.msra.mxu0 0.0
    %384 = vmatprep.subr.mxu0 0.0
    %385 = vmatpush1.xpose.msra.mxu0 0.0
    %386 = vmatprep.subr.mxu0 0.0
    %387 = vmatpush1.xpose.msra.mxu0 0.0
    %388 = vmatprep.subr.mxu0 0.0
    %389 = vmatpush1.xpose.msra.mxu0 0.0
    %390 = vmatprep.subr.mxu0 0.0
    %391 = vmatpush1.xpose.msra.mxu0 0.0
    %392 = vmatprep.subr.mxu0 0.0
    %393 = vmatpush1.xpose.msra.mxu0 0.0
    %394 = vmatprep.subr.mxu0 0.0
    %395 = vmatpush1.xpose.msra.mxu0 0.0
    %396 = vmatprep.subr.mxu0 0.0
    %397 = vmatpush1.xpose.msra.mxu0 0.0
    %398 = vmatprep.subr.mxu0 0.0
    %399 = vmatpush1.xpose.msra.mxu0 %v366
    %400 = vmatprep.subr.mxu0 0.0
    %401 = vmatpush2.xpose.msra.mxu0 0.0
    %402 = vmatprep.subr.mxu0 0.0
    %403 = vmatpush2.xpose.msra.mxu0 0.0
    %404 = vmatprep.subr.mxu0 0.0
    %405 = vmatpush2.xpose.msra.mxu0 0.0
    %406 = vmatprep.subr.mxu0 0.0
    %407 = vmatpush2.xpose.msra.mxu0 0.0
    %408 = vmatprep.subr.mxu0 0.0
    %409 = vmatpush2.xpose.msra.mxu0 0.0
    %410 = vmatprep.subr.mxu0 0.0
    %411 = vmatpush2.xpose.msra.mxu0 0.0
    %412 = vmatprep.subr.mxu0 0.0
    %413 = vmatpush2.xpose.msra.mxu0 0.0
    %414 = vmatprep.subr.mxu0 0.0
    %415 = vmatpush2.xpose.msra.mxu0 0.0
    %416 = vmatprep.subr.mxu0 0.0
    %417 = vmatpush2.xpose.msra.mxu0 0.0
    %418 = vmatprep.subr.mxu0 0.0
    %419 = vmatpush2.xpose.msra.mxu0 0.0
    %420 = vmatprep.subr.mxu0 0.0
    %421 = vmatpush2.xpose.msra.mxu0 0.0
    %422 = vmatprep.subr.mxu0 0.0
    %423 = vmatpush2.xpose.msra.mxu0 0.0
    %424 = vmatprep.subr.mxu0 0.0
    %425 = vmatpush2.xpose.msra.mxu0 0.0
    %426 = vmatprep.subr.mxu0 0.0
    %427 = vmatpush2.xpose.msra.mxu0 0.0
    %428 = vmatprep.subr.mxu0 0.0
    %429 = vmatpush2.xpose.msra.mxu0 0.0
    %430 = vmatprep.subr.mxu0 0.0
    %431 = vmatpush2.xpose.msra.mxu0 0.0
    %432 = vmatprep.mubr.f32.mxu0 0.0
    %433 = vmatmul.mubr.f32.gmra.mxu0 %v363
    %v434 = vpop.f32.mrf.mxu0
    %v435 = vadd.f32 0.0, %v434
    %v436 = vpop.f32.mrf.mxu0
    %437 = vdwg.mxu0
    %vm438 = vcmask 64512
    %v439 = vsel %vm438, %v359, -inf
    %440 = vmax.xlane.f32.xlu0 %v439
    %v441 = vpop.xlane.xlu0 %440
    %v442 = vsel %vm438, %v435, -inf
    %443 = vmax.xlane.f32.xlu0 %v442
    %v444 = vpop.xlane.xlu0 %443
    %v445 = vsub.f32 %v359, %v441
    %v446 = vsub.f32 %v435, %v444
    %v447 = vmul.f32 %v445, 1.442695
    %v448 = vpow.pop %v447
    %v449 = vmul.f32 %v446, 1.442695
    %v450 = vpow.pop %v449
    %v451 = vsel %vm438, %v448, 0.0
    %452 = vadd.xlane.f32.xlu0 %v451
    %v453 = vpop.xlane.xlu0 %452
    %v454 = vsel %vm438, %v450, 0.0
    %455 = vadd.xlane.f32.xlu0 %v454
    %v456 = vpop.xlane.xlu0 %455
    %457 = vrot.lane.b32.xlu0 %v277, 96
    %v458 = vpop.permute.xlu0 %457
    %v461 = vsel %vm438, %v448, 0
    %463 = vmatprep.subr.mxu0 0.0
    %464 = vmatpush1.msra.mxu0 0.0
    %465 = vmatprep.subr.mxu0 0.0
    %466 = vmatpush1.msra.mxu0 0.0
    %467 = vmatprep.subr.mxu0 0.0
    %468 = vmatpush1.msra.mxu0 0.0
    %469 = vmatprep.subr.mxu0 0.0
    %470 = vmatpush1.msra.mxu0 0.0
    %471 = vmatprep.subr.mxu0 0.0
    %472 = vmatpush1.msra.mxu0 0.0
    %473 = vmatprep.subr.mxu0 0.0
    %474 = vmatpush1.msra.mxu0 0.0
    %475 = vmatprep.subr.mxu0 0.0
    %476 = vmatpush1.msra.mxu0 0.0
    %477 = vmatprep.subr.mxu0 0.0
    %478 = vmatpush1.msra.mxu0 0.0
    %479 = vmatprep.subr.mxu0 0.0
    %480 = vmatpush1.msra.mxu0 0.0
    %481 = vmatprep.subr.mxu0 0.0
    %482 = vmatpush1.msra.mxu0 0.0
    %483 = vmatprep.subr.mxu0 0.0
    %484 = vmatpush1.msra.mxu0 0.0
    %485 = vmatprep.subr.mxu0 0.0
    %486 = vmatpush1.msra.mxu0 0.0
    %487 = vmatprep.subr.mxu0 0.0
    %488 = vmatpush1.msra.mxu0 0.0
    %489 = vmatprep.subr.mxu0 0.0
    %490 = vmatpush1.msra.mxu0 0.0
    %491 = vmatprep.subr.mxu0 0.0
    %492 = vmatpush1.msra.mxu0 0.0
    %493 = vmatprep.subr.mxu0 0.0
    %494 = vmatpush1.msra.mxu0 %v458
    %495 = vmatprep.subr.mxu0 0.0
    %496 = vmatpush2.msra.mxu0 0.0
    %497 = vmatprep.subr.mxu0 0.0
    %498 = vmatpush2.msra.mxu0 0.0
    %499 = vmatprep.subr.mxu0 0.0
    %500 = vmatpush2.msra.mxu0 0.0
    %501 = vmatprep.subr.mxu0 0.0
    %502 = vmatpush2.msra.mxu0 0.0
    %503 = vmatprep.subr.mxu0 0.0
    %504 = vmatpush2.msra.mxu0 0.0
    %505 = vmatprep.subr.mxu0 0.0
    %506 = vmatpush2.msra.mxu0 0.0
    %507 = vmatprep.subr.mxu0 0.0
    %508 = vmatpush2.msra.mxu0 0.0
    %509 = vmatprep.subr.mxu0 0.0
    %510 = vmatpush2.msra.mxu0 0.0
    %511 = vmatprep.subr.mxu0 0.0
    %512 = vmatpush2.msra.mxu0 0.0
    %513 = vmatprep.subr.mxu0 0.0
    %514 = vmatpush2.msra.mxu0 0.0
    %515 = vmatprep.subr.mxu0 0.0
    %516 = vmatpush2.msra.mxu0 0.0
    %517 = vmatprep.subr.mxu0 0.0
    %518 = vmatpush2.msra.mxu0 0.0
    %519 = vmatprep.subr.mxu0 0.0
    %520 = vmatpush2.msra.mxu0 0.0
    %521 = vmatprep.subr.mxu0 0.0
    %522 = vmatpush2.msra.mxu0 0.0
    %523 = vmatprep.subr.mxu0 0.0
    %524 = vmatpush2.msra.mxu0 0.0
    %525 = vmatprep.subr.mxu0 0.0
    %526 = vmatpush2.msra.mxu0 0.0
    %527 = vmatprep.mubr.f32.mxu0 0.0
    %528 = vmatmul.mubr.f32.gmra.mxu0 %v461
    %v529 = vpop.f32.mrf.mxu0
    %v530 = vadd.f32 0.0, %v529
    %v531 = vpop.f32.mrf.mxu0
    %532 = vdwg.mxu0
    %533 = vrot.lane.b32.xlu0 %v282, 96
    %v534 = vpop.permute.xlu0 %533
    %v537 = vsel %vm438, %v450, 0
    %539 = vmatprep.subr.mxu0 0.0
    %540 = vmatpush1.msra.mxu0 0.0
    %541 = vmatprep.subr.mxu0 0.0
    %542 = vmatpush1.msra.mxu0 0.0
    %543 = vmatprep.subr.mxu0 0.0
    %544 = vmatpush1.msra.mxu0 0.0
    %545 = vmatprep.subr.mxu0 0.0
    %546 = vmatpush1.msra.mxu0 0.0
    %547 = vmatprep.subr.mxu0 0.0
    %548 = vmatpush1.msra.mxu0 0.0
    %549 = vmatprep.subr.mxu0 0.0
    %550 = vmatpush1.msra.mxu0 0.0
    %551 = vmatprep.subr.mxu0 0.0
    %552 = vmatpush1.msra.mxu0 0.0
    %553 = vmatprep.subr.mxu0 0.0
    %554 = vmatpush1.msra.mxu0 0.0
    %555 = vmatprep.subr.mxu0 0.0
    %556 = vmatpush1.msra.mxu0 0.0
    %557 = vmatprep.subr.mxu0 0.0
    %558 = vmatpush1.msra.mxu0 0.0
    %559 = vmatprep.subr.mxu0 0.0
    %560 = vmatpush1.msra.mxu0 0.0
    %561 = vmatprep.subr.mxu0 0.0
    %562 = vmatpush1.msra.mxu0 0.0
    %563 = vmatprep.subr.mxu0 0.0
    %564 = vmatpush1.msra.mxu0 0.0
    %565 = vmatprep.subr.mxu0 0.0
    %566 = vmatpush1.msra.mxu0 0.0
    %567 = vmatprep.subr.mxu0 0.0
    %568 = vmatpush1.msra.mxu0 0.0
    %569 = vmatprep.subr.mxu0 0.0
    %570 = vmatpush1.msra.mxu0 %v534
    %571 = vmatprep.subr.mxu0 0.0
    %572 = vmatpush2.msra.mxu0 0.0
    %573 = vmatprep.subr.mxu0 0.0
    %574 = vmatpush2.msra.mxu0 0.0
    %575 = vmatprep.subr.mxu0 0.0
    %576 = vmatpush2.msra.mxu0 0.0
    %577 = vmatprep.subr.mxu0 0.0
    %578 = vmatpush2.msra.mxu0 0.0
    %579 = vmatprep.subr.mxu0 0.0
    %580 = vmatpush2.msra.mxu0 0.0
    %581 = vmatprep.subr.mxu0 0.0
    %582 = vmatpush2.msra.mxu0 0.0
    %583 = vmatprep.subr.mxu0 0.0
    %584 = vmatpush2.msra.mxu0 0.0
    %585 = vmatprep.subr.mxu0 0.0
    %586 = vmatpush2.msra.mxu0 0.0
    %587 = vmatprep.subr.mxu0 0.0
    %588 = vmatpush2.msra.mxu0 0.0
    %589 = vmatprep.subr.mxu0 0.0
    %590 = vmatpush2.msra.mxu0 0.0
    %591 = vmatprep.subr.mxu0 0.0
    %592 = vmatpush2.msra.mxu0 0.0
    %593 = vmatprep.subr.mxu0 0.0
    %594 = vmatpush2.msra.mxu0 0.0
    %595 = vmatprep.subr.mxu0 0.0
    %596 = vmatpush2.msra.mxu0 0.0
    %597 = vmatprep.subr.mxu0 0.0
    %598 = vmatpush2.msra.mxu0 0.0
    %599 = vmatprep.subr.mxu0 0.0
    %600 = vmatpush2.msra.mxu0 0.0
    %601 = vmatprep.subr.mxu0 0.0
    %602 = vmatpush2.msra.mxu0 0.0
    %603 = vmatprep.mubr.f32.mxu0 0.0
    %604 = vmatmul.mubr.f32.gmra.mxu0 %v537
    %v605 = vpop.f32.mrf.mxu0
    %v606 = vadd.f32 0.0, %v605
    %v607 = vpop.f32.mrf.mxu0
    %608 = vdwg.mxu0
    %v609 = vrcp.pop %v453
    %v610 = vrcp.pop %v456
    %v611 = vmul.f32 %v530, %v609
    %v612 = vmul.f32 %v606, %v610
    %613 = vrot.lane.b32.xlu0 %v277, 63
    %v614 = vpop.permute.xlu0 %613
    %vm615 = vcmask 269312
    %v617 = vsel %vm615, %v611, 0
    %v619 = vsel %vm615, %v614, 0
    %621 = vmatprep.subr.mxu0 0.0
    %622 = vmatpush1.xpose.msra.mxu0 0.0
    %623 = vmatprep.subr.mxu0 0.0
    %624 = vmatpush1.xpose.msra.mxu0 0.0
    %625 = vmatprep.subr.mxu0 0.0
    %626 = vmatpush1.xpose.msra.mxu0 0.0
    %627 = vmatprep.subr.mxu0 0.0
    %628 = vmatpush1.xpose.msra.mxu0 0.0
    %629 = vmatprep.subr.mxu0 0.0
    %630 = vmatpush1.xpose.msra.mxu0 0.0
    %631 = vmatprep.subr.mxu0 0.0
    %632 = vmatpush1.xpose.msra.mxu0 0.0
    %633 = vmatprep.subr.mxu0 0.0
    %634 = vmatpush1.xpose.msra.mxu0 0.0
    %635 = vmatprep.subr.mxu0 0.0
    %636 = vmatpush1.xpose.msra.mxu0 0.0
    %637 = vmatprep.subr.mxu0 0.0
    %638 = vmatpush1.xpose.msra.mxu0 0.0
    %639 = vmatprep.subr.mxu0 0.0
    %640 = vmatpush1.xpose.msra.mxu0 0.0
    %641 = vmatprep.subr.mxu0 0.0
    %642 = vmatpush1.xpose.msra.mxu0 0.0
    %643 = vmatprep.subr.mxu0 0.0
    %644 = vmatpush1.xpose.msra.mxu0 0.0
    %645 = vmatprep.subr.mxu0 0.0
    %646 = vmatpush1.xpose.msra.mxu0 0.0
    %647 = vmatprep.subr.mxu0 0.0
    %648 = vmatpush1.xpose.msra.mxu0 0.0
    %649 = vmatprep.subr.mxu0 0.0
    %650 = vmatpush1.xpose.msra.mxu0 0.0
    %651 = vmatprep.subr.mxu0 0.0
    %652 = vmatpush1.xpose.msra.mxu0 %v619
    %653 = vmatprep.subr.mxu0 0.0
    %654 = vmatpush2.xpose.msra.mxu0 0.0
    %655 = vmatprep.subr.mxu0 0.0
    %656 = vmatpush2.xpose.msra.mxu0 0.0
    %657 = vmatprep.subr.mxu0 0.0
    %658 = vmatpush2.xpose.msra.mxu0 0.0
    %659 = vmatprep.subr.mxu0 0.0
    %660 = vmatpush2.xpose.msra.mxu0 0.0
    %661 = vmatprep.subr.mxu0 0.0
    %662 = vmatpush2.xpose.msra.mxu0 0.0
    %663 = vmatprep.subr.mxu0 0.0
    %664 = vmatpush2.xpose.msra.mxu0 0.0
    %665 = vmatprep.subr.mxu0 0.0
    %666 = vmatpush2.xpose.msra.mxu0 0.0
    %667 = vmatprep.subr.mxu0 0.0
    %668 = vmatpush2.xpose.msra.mxu0 0.0
    %669 = vmatprep.subr.mxu0 0.0
    %670 = vmatpush2.xpose.msra.mxu0 0.0
    %671 = vmatprep.subr.mxu0 0.0
    %672 = vmatpush2.xpose.msra.mxu0 0.0
    %673 = vmatprep.subr.mxu0 0.0
    %674 = vmatpush2.xpose.msra.mxu0 0.0
    %675 = vmatprep.subr.mxu0 0.0
    %676 = vmatpush2.xpose.msra.mxu0 0.0
    %677 = vmatprep.subr.mxu0 0.0
    %678 = vmatpush2.xpose.msra.mxu0 0.0
    %679 = vmatprep.subr.mxu0 0.0
    %680 = vmatpush2.xpose.msra.mxu0 0.0
    %681 = vmatprep.subr.mxu0 0.0
    %682 = vmatpush2.xpose.msra.mxu0 0.0
    %683 = vmatprep.subr.mxu0 0.0
    %684 = vmatpush2.xpose.msra.mxu0 0.0
    %685 = vmatprep.mubr.f32.mxu0 0.0
    %686 = vmatmul.mubr.f32.gmra.mxu0 %v617
    %v687 = vpop.f32.mrf.mxu0
    %v688 = vadd.f32 0.0, %v687
    %v689 = vpop.f32.mrf.mxu0
    %690 = vdwg.mxu0
    %691 = vrot.lane.b32.xlu0 %v282, 63
    %v692 = vpop.permute.xlu0 %691
    %v694 = vsel %vm615, %v612, 0
    %v696 = vsel %vm615, %v692, 0
    %698 = vmatprep.subr.mxu0 0.0
    %699 = vmatpush1.xpose.msra.mxu0 0.0
    %700 = vmatprep.subr.mxu0 0.0
    %701 = vmatpush1.xpose.msra.mxu0 0.0
    %702 = vmatprep.subr.mxu0 0.0
    %703 = vmatpush1.xpose.msra.mxu0 0.0
    %704 = vmatprep.subr.mxu0 0.0
    %705 = vmatpush1.xpose.msra.mxu0 0.0
    %706 = vmatprep.subr.mxu0 0.0
    %707 = vmatpush1.xpose.msra.mxu0 0.0
    %708 = vmatprep.subr.mxu0 0.0
    %709 = vmatpush1.xpose.msra.mxu0 0.0
    %710 = vmatprep.subr.mxu0 0.0
    %711 = vmatpush1.xpose.msra.mxu0 0.0
    %712 = vmatprep.subr.mxu0 0.0
    %713 = vmatpush1.xpose.msra.mxu0 0.0
    %714 = vmatprep.subr.mxu0 0.0
    %715 = vmatpush1.xpose.msra.mxu0 0.0
    %716 = vmatprep.subr.mxu0 0.0
    %717 = vmatpush1.xpose.msra.mxu0 0.0
    %718 = vmatprep.subr.mxu0 0.0
    %719 = vmatpush1.xpose.msra.mxu0 0.0
    %720 = vmatprep.subr.mxu0 0.0
    %721 = vmatpush1.xpose.msra.mxu0 0.0
    %722 = vmatprep.subr.mxu0 0.0
    %723 = vmatpush1.xpose.msra.mxu0 0.0
    %724 = vmatprep.subr.mxu0 0.0
    %725 = vmatpush1.xpose.msra.mxu0 0.0
    %726 = vmatprep.subr.mxu0 0.0
    %727 = vmatpush1.xpose.msra.mxu0 0.0
    %728 = vmatprep.subr.mxu0 0.0
    %729 = vmatpush1.xpose.msra.mxu0 %v696
    %730 = vmatprep.subr.mxu0 0.0
    %731 = vmatpush2.xpose.msra.mxu0 0.0
    %732 = vmatprep.subr.mxu0 0.0
    %733 = vmatpush2.xpose.msra.mxu0 0.0
    %734 = vmatprep.subr.mxu0 0.0
    %735 = vmatpush2.xpose.msra.mxu0 0.0
    %736 = vmatprep.subr.mxu0 0.0
    %737 = vmatpush2.xpose.msra.mxu0 0.0
    %738 = vmatprep.subr.mxu0 0.0
    %739 = vmatpush2.xpose.msra.mxu0 0.0
    %740 = vmatprep.subr.mxu0 0.0
    %741 = vmatpush2.xpose.msra.mxu0 0.0
    %742 = vmatprep.subr.mxu0 0.0
    %743 = vmatpush2.xpose.msra.mxu0 0.0
    %744 = vmatprep.subr.mxu0 0.0
    %745 = vmatpush2.xpose.msra.mxu0 0.0
    %746 = vmatprep.subr.mxu0 0.0
    %747 = vmatpush2.xpose.msra.mxu0 0.0
    %748 = vmatprep.subr.mxu0 0.0
    %749 = vmatpush2.xpose.msra.mxu0 0.0
    %750 = vmatprep.subr.mxu0 0.0
    %751 = vmatpush2.xpose.msra.mxu0 0.0
    %752 = vmatprep.subr.mxu0 0.0
    %753 = vmatpush2.xpose.msra.mxu0 0.0
    %754 = vmatprep.subr.mxu0 0.0
    %755 = vmatpush2.xpose.msra.mxu0 0.0
    %756 = vmatprep.subr.mxu0 0.0
    %757 = vmatpush2.xpose.msra.mxu0 0.0
    %758 = vmatprep.subr.mxu0 0.0
    %759 = vmatpush2.xpose.msra.mxu0 0.0
    %760 = vmatprep.subr.mxu0 0.0
    %761 = vmatpush2.xpose.msra.mxu0 0.0
    %762 = vmatprep.mubr.f32.mxu0 0.0
    %763 = vmatmul.mubr.f32.gmra.mxu0 %v694
    %v764 = vpop.f32.mrf.mxu0
    %v765 = vadd.f32 0.0, %v764
    %v766 = vpop.f32.mrf.mxu0
    %767 = vdwg.mxu0
    %v768 = vld [vmem:[#allocation7] sm:$0xff]
    %v769 = vld [vmem:[#allocation7 + $0x8] sm:$0xff]
    %vm770 = vcmp.eq.f32.partialorder %v768, 0.0
    %vm771 = vcmp.eq.f32.partialorder %v769, 0.0
    %v772 = vsel %vm770, -1e+08, %v688
    %v773 = vsel %vm771, -1e+08, %v765
    %v774 = vmax.f32 %v772, 0.0
    %v775 = vmax.f32 %v773, 0.0
    %v776 = vand.u32 2147483647, %v772
    %v777 = vand.u32 2147483647, %v773
    %v778 = vsub.f32 0.0, %v776
    %v779 = vsub.f32 0.0, %v777
    %v780 = vmul.f32 %v778, 1.442695
    %v781 = vpow.pop %v780
    %v782 = vmul.f32 %v779, 1.442695
    %v783 = vpow.pop %v782
    %v784 = vadd.f32 %v781, 1.0
    %v785 = vadd.f32 %v783, 1.0
    %v786 = vlog2.pop %v784
    %v787 = vmul.f32 %v786, 0.6931472
    %v788 = vlog2.pop %v785
    %v789 = vmul.f32 %v788, 0.6931472
    %v790 = vadd.f32 %v774, %v787
    %v791 = vadd.f32 %v775, %v789
    %792 = vst.msk [vmem:[#allocation11] sm:$0xff] %vm438, %v790
    %793 = vst.msk [vmem:[#allocation11 + $0x8] sm:$0xff] %vm438, %v791
    // Predicated region
    $region50: #{tpu_custom_call.1} parent=1 // pred_check
      _
    $region51: #{tpu_custom_call.1} parent=1 // pred_check_branch
      %795 = sbr.rel (0) target = $region53
    $region52: #{tpu_custom_call.1} parent=1 // pred_region
      %s797 = ssub.s32 256, 256
      %798 = vsyncadd [#allocation4], %s797
      %s799 = sshll.u32 [#allocation11], 4
      %s800 = int_to_ptr.vmem [resolvable:$true] %s799
      %805 = dma.vmem_to_hbm [thread:$0]  %s800, 256, %s7, [#allocation4], 128, 128, 8
    $region53: #{tpu_custom_call.1} parent=1 // pred_fallthru
      _
    // Predicated region
    $region54: #{tpu_custom_call.1} parent=1 // pred_check
      _
    $region55: #{tpu_custom_call.1} parent=1 // pred_check_branch
      %807 = sbr.rel (0) target = $region57
    $region56: #{tpu_custom_call.1} parent=1 // pred_region
      %808 = dma.done [#allocation4], 256
    $region57: #{tpu_custom_call.1} parent=1 // pred_fallthru
      _
    %809 = vsyncpa [#allocation3], 1
    %810 = vsyncpa [#allocation6], 1
    %811 = vsyncpa [#allocation9], 1
    %812 = vsyncpa [#allocation4], 1

</llo_original>
